<compile_context>
chip_gen: v6e
topology: v6e:2x2x1
jax: 0.10.0
libtpu: 0.0.40
codegen_flags: <defaults>
</compile_context>

<pallas_src>
import functools

import jax
import jax.numpy as jnp
import numpy as np
from jax.experimental import pallas as pl
from jax.experimental.pallas import tpu as pltpu


def _conv1d_im2col_kernel(*refs, kernel_size, stride, tile_t, n_views, compute_dtype):
    """refs = (x_view_0, ..., x_view_{n_views-1}, w_ref, b_ref, o_ref).

    x views:  (C_in, TILE_T*stride) each, consecutive in time (halo comes from
              the later views).
    w_ref:    (C_out, K*C_in)  folded weight, row index = k*C_in + c_in.
    b_ref:    (C_out, 1)
    o_ref:    (C_out, TILE_T)
    """
    x_refs = refs[:n_views]
    w_ref, b_ref, o_ref = refs[n_views:n_views + 3]

    if n_views > 1:
        xx = jnp.concatenate([r[...] for r in x_refs], axis=1)
    else:
        xx = x_refs[0][...]
    c_in = xx.shape[0]

    # Build the im2col activation: K lane-shifted slices packed along sublanes.
    rows = []
    for k in range(kernel_size):  # static, unrolled
        if stride == 1:
            rows.append(xx[:, k:k + tile_t])
        else:
            rows.append(
                jax.lax.slice(
                    xx,
                    (0, k),
                    (c_in, k + (tile_t - 1) * stride + 1),
                    (1, stride),
                )
            )
    xcol = jnp.concatenate(rows, axis=0)  # (K*C_in, TILE_T)

    w = w_ref[...]
    if compute_dtype is not None:
        xcol = xcol.astype(compute_dtype)
        w = w.astype(compute_dtype)

    # Single MXU matmul, f32 accumulation; bias added in f32.
    acc = jnp.dot(w, xcol, preferred_element_type=jnp.float32)  # (C_out, TILE_T)
    o_ref[...] = (acc + b_ref[...].astype(jnp.float32)).astype(o_ref.dtype)


def pallas_conv1d(x, w_folded, bias2, *, kernel_size, stride, compute_dtype=None):
    """Valid 1D conv. x: (C_in, L); w_folded: (C_out, K*C_in); bias2: (C_out, 1)."""
    c_in, L = x.shape
    c_out = w_folded.shape[0]
    K = kernel_size
    y_len = (L - K) // stride + 1
    assert y_len >= 1

    # Lane-dense output tiles (multiple of 128), capped for tiny per-step VMEM.
    tile_t = min(512, 128 * pl.cdiv(y_len, 128))
    num_tiles = pl.cdiv(y_len, tile_t)
    bx = tile_t * stride                      # x columns per blocked view
    need = (tile_t - 1) * stride + K          # x columns needed per output tile
    n_views = pl.cdiv(need, bx)               # consecutive views incl. halo (>= 2)

    # Zero-pad x so every view of every tile is in-bounds (padding only affects
    # output positions >= y_len, which are sliced off below).
    L_pad = (num_tiles - 1 + n_views) * bx
    if L_pad > L:
        x = jnp.pad(x, ((0, 0), (0, L_pad - L)))

    kern = functools.partial(
        _conv1d_im2col_kernel,
        kernel_size=K, stride=stride, tile_t=tile_t,
        n_views=n_views, compute_dtype=compute_dtype,
    )

    x_specs = [
        pl.BlockSpec((c_in, bx), lambda i, v=v: (0, i + v)) for v in range(n_views)
    ]

    y_pad = pl.pallas_call(
        kern,
        out_shape=jax.ShapeDtypeStruct((c_out, num_tiles * tile_t), x.dtype),
        grid=(num_tiles,),
        in_specs=x_specs + [
            pl.BlockSpec((c_out, K * c_in), lambda i: (0, 0)),
            pl.BlockSpec((c_out, 1), lambda i: (0, 0)),
        ],
        out_specs=pl.BlockSpec((c_out, tile_t), lambda i: (0, i)),
        compiler_params=pltpu.CompilerParams(
            dimension_semantics=("parallel",),  # time tiles shard across v7x TCs
        ),
    )(*([x] * n_views), w_folded, bias2)

    return y_pad[:, :y_len]


class Conv1DStreaming:
    """JAX port of the PyTorch Conv1D_streaming module (state kept host-side)."""

    def __init__(self, in_channels, out_channels, kernel_size, max_output_size,
                 bias_flag=True, stride=1, key=None, compute_dtype=None):
        assert stride < kernel_size, "stride must be smaller than kernel_size"
        self.in_channels = in_channels
        self.out_channels = out_channels
        self.kernel_size = kernel_size
        self.stride = stride
        self.bias_flag = bias_flag
        self.max_output_size = max_output_size
        self.compute_dtype = compute_dtype

        if key is None:
            key = jax.random.PRNGKey(0)
        k_w, k_b = jax.random.split(key)
        # nn.init.uniform_ -> U[0, 1)
        self.kernel = jax.random.uniform(
            k_w, (out_channels, in_channels, kernel_size), jnp.float32)
        self.bias = (jax.random.uniform(k_b, (out_channels,), jnp.float32)
                     if bias_flag else None)

        # Precompute (once) the folded weight (C_out, K*C_in) and (C_out, 1) bias
        # used by the Pallas kernel, instead of transposing every forward call.
        self.w_folded = jnp.transpose(self.kernel, (0, 2, 1)).reshape(
            out_channels, kernel_size * in_channels)
        self.b2 = (self.bias.reshape(out_channels, 1)
                   if bias_flag else jnp.zeros((out_channels, 1), jnp.float32))

        self.input_buffer_size = kernel_size - 1
        self.input_buffer = jnp.zeros((in_channels, self.input_buffer_size), jnp.float32)
        self.input_counter = 0
        self.output_buffer = jnp.zeros((out_channels, max_output_size), jnp.float32)
        self.output_counter = 0

    def forward(self, x):
        assert x.shape[0] == self.in_channels, "input samples x has the wrong number of channels"
        if self.output_counter >= self.max_output_size:
            print("REACH OUTPUT NUMBER MAXIMUM")
            return -1

        prev_len = self.input_counter - self.output_counter * self.stride
        self.input_counter += x.shape[1]
        x_len = prev_len + x.shape[1]
        if prev_len != 0:
            x = jnp.concatenate([self.input_buffer[:, -prev_len:], x], axis=1)

        y_len = max((x_len - self.kernel_size) // self.stride + 1, 0)
        y_start = self.output_counter
        y_end = min(y_start + y_len, self.max_output_size)
        push_len = self.kernel_size - (y_end * self.stride + self.kernel_size - self.input_counter)
        if push_len > 0:
            self.input_buffer = self.input_buffer.at[:, -push_len:].set(x[:, -push_len:])

        if y_len == 0:
            return None

        # Hot path: streaming conv as a single-matmul im2col Pallas TPU kernel.
        y = pallas_conv1d(
            x, self.w_folded, self.b2,
            kernel_size=self.kernel_size, stride=self.stride,
            compute_dtype=self.compute_dtype,
        )  # (C_out, y_len)
        y_clip = y[:, : y_end - y_start]
        self.output_buffer = self.output_buffer.at[:, y_start:y_end].set(y_clip)
        self.output_counter = y_end
        return self.output_buffer[:, y_start:y_end]


def _reference_conv1d(x, weight, bias, stride):
    """Pure-JAX reference mirroring the PyTorch as_strided + tensordot path."""
    c_in, L = x.shape
    c_out, _, K = weight.shape
    y_len = (L - K) // stride + 1
    taps = jnp.stack(
        [jax.lax.slice(x, (0, k), (c_in, k + (y_len - 1) * stride + 1), (1, stride))
         for k in range(K)], axis=-1)                       # (C_in, y_len, K)
    y = jnp.tensordot(taps, weight, axes=([0, 2], [1, 2]))  # (y_len, C_out)
    if bias is not None:
        y = y + bias
    return y.T                                              # (C_out, y_len)


if __name__ == "__main__":
    key = jax.random.PRNGKey(0)
    k_mod, k_x1, k_x2, k_xs = jax.random.split(key, 4)

    in_channels, out_channels = 4, 8
    kernel_size, stride = 4, 1
    max_output_size = 32

    mod = Conv1DStreaming(in_channels, out_channels, kernel_size,
                          max_output_size, bias_flag=True, stride=stride, key=k_mod)

    # --- streaming check: two chunks must reproduce the full-signal conv ---
    x1 = jax.random.normal(k_x1, (in_channels, 16), jnp.float32)
    x2 = jax.random.normal(k_x2, (in_channels, 16), jnp.float32)

    out1 = jax.block_until_ready(mod.forward(x1))   # (8, 13)
    out2 = jax.block_until_ready(mod.forward(x2))   # (8, 16)
    assert out1.shape == (out_channels, 13)
    assert out2.shape == (out_channels, 16)

    x_full = jnp.concatenate([x1, x2], axis=1)      # (4, 32)
    ref = _reference_conv1d(x_full, mod.kernel, mod.bias, stride)   # (8, 29)
    got = mod.output_buffer[:, :mod.output_counter]
    np.testing.assert_allclose(np.asarray(got), np.asarray(ref), rtol=1e-5, atol=1e-5)

    # --- strided (stride=2) direct kernel check ---
    s2 = 2
    w2 = jax.random.uniform(jax.random.PRNGKey(1),
                            (out_channels, in_channels, kernel_size), jnp.float32)
    b2v = jax.random.uniform(jax.random.PRNGKey(2), (out_channels,), jnp.float32)
    xs = jax.random.normal(k_xs, (in_channels, 64), jnp.float32)
    w2_folded = jnp.transpose(w2, (0, 2, 1)).reshape(
        out_channels, kernel_size * in_channels)
    ys = pallas_conv1d(xs, w2_folded, b2v.reshape(out_channels, 1),
                       kernel_size=kernel_size, stride=s2)
    ys = jax.block_until_ready(ys)
    ref_s = _reference_conv1d(xs, w2, b2v, s2)
    np.testing.assert_allclose(np.asarray(ys), np.asarray(ref_s), rtol=1e-5, atol=1e-5)

    print("KERNEL_OK")
</pallas_src>

<mosaic_0001>
module attributes {stable_mosaic.version = 11 : i64} {
  func.func @_conv1d_im2col_kernel(%arg0: i32, %arg1: memref<4x128xf32, #tpu.memory_space<vmem>>, %arg2: memref<4x128xf32, #tpu.memory_space<vmem>>, %arg3: memref<8x16xf32, #tpu.memory_space<vmem>>, %arg4: memref<8x1xf32, #tpu.memory_space<vmem>>, %arg5: memref<8x128xf32, #tpu.memory_space<vmem>>) attributes {dimension_semantics = [#tpu.dimension_semantics<parallel>], iteration_bounds = array<i64: 1>, scalar_prefetch = 0 : i64, scratch_operands = 0 : i64, tpu.core_type = #tpu.core_type<tc>, window_params = [{transform_indices = @transform_0, window_bounds = array<i64: 4, 128>}, {transform_indices = @transform_1, window_bounds = array<i64: 4, 128>}, {pipeline_mode = #tpu.pipeline_mode<synchronous>, transform_indices = @transform_2, window_bounds = array<i64: 8, 16>}, {pipeline_mode = #tpu.pipeline_mode<synchronous>, transform_indices = @transform_3, window_bounds = array<i64: 8, 1>}, {transform_indices = @transform_4, window_bounds = array<i64: 8, 128>}]} {
    %c0 = arith.constant 0 : index
    %c0_0 = arith.constant 0 : index
    %0 = vector.load %arg1[%c0, %c0_0] : memref<4x128xf32, #tpu.memory_space<vmem>>, vector<4x128xf32>
    %c0_1 = arith.constant 0 : index
    %c0_2 = arith.constant 0 : index
    %1 = vector.load %arg2[%c0_1, %c0_2] : memref<4x128xf32, #tpu.memory_space<vmem>>, vector<4x128xf32>
    %2 = tpu.concatenate %0, %1 in 1 : vector<4x128xf32>, vector<4x128xf32> -> vector<4x256xf32>
    %3 = vector.extract_strided_slice %2 {offsets = [0, 0], sizes = [4, 128], strides = [1, 1]} : vector<4x256xf32> to vector<4x128xf32>
    %4 = vector.extract_strided_slice %2 {offsets = [0, 1], sizes = [4, 128], strides = [1, 1]} : vector<4x256xf32> to vector<4x128xf32>
    %5 = vector.extract_strided_slice %2 {offsets = [0, 2], sizes = [4, 128], strides = [1, 1]} : vector<4x256xf32> to vector<4x128xf32>
    %6 = vector.extract_strided_slice %2 {offsets = [0, 3], sizes = [4, 128], strides = [1, 1]} : vector<4x256xf32> to vector<4x128xf32>
    %7 = tpu.concatenate %3, %4, %5, %6 in 0 : vector<4x128xf32>, vector<4x128xf32>, vector<4x128xf32>, vector<4x128xf32> -> vector<16x128xf32>
    %c0_3 = arith.constant 0 : index
    %c0_4 = arith.constant 0 : index
    %8 = vector.load %arg3[%c0_3, %c0_4] : memref<8x16xf32, #tpu.memory_space<vmem>>, vector<8x16xf32>
    %cst = arith.constant dense<0.000000e+00> : vector<8x128xf32>
    %9 = tpu.matmul %8, %7, %cst {dimension_numbers = #tpu.dot_dimension_numbers<[1], [0], [0], [1], [0, 0, 1, 1], [], []>} : vector<8x16xf32>, vector<16x128xf32>, vector<8x128xf32> -> vector<8x128xf32>
    %c0_5 = arith.constant 0 : index
    %c0_6 = arith.constant 0 : index
    %10 = vector.load %arg4[%c0_5, %c0_6] : memref<8x1xf32, #tpu.memory_space<vmem>>, vector<8x1xf32>
    %11 = vector.broadcast %10 : vector<8x1xf32> to vector<8x128xf32>
    %12 = arith.addf %9, %11 : vector<8x128xf32>
    %c0_7 = arith.constant 0 : index
    %c0_8 = arith.constant 0 : index
    %13 = vector.load %arg5[%c0_7, %c0_8] : memref<8x128xf32, #tpu.memory_space<vmem>>, vector<8x128xf32>
    tpu.vector_store %arg5[%c0_7, %c0_8], %12 {strides = array<i32>} : memref<8x128xf32, #tpu.memory_space<vmem>>, vector<8x128xf32>,
    return
  }
  func.func @transform_0(%arg0: i32) -> (i32, i32) {
    %c0_i32 = arith.constant 0 : i32
    %0 = arith.addi %arg0, %c0_i32 : i32
    %c0_i32_0 = arith.constant 0 : i32
    %c0_i32_1 = arith.constant 0 : i32
    return %c0_i32_0, %0 : i32, i32
  }
  func.func @transform_1(%arg0: i32) -> (i32, i32) {
    %c1_i32 = arith.constant 1 : i32
    %0 = arith.addi %arg0, %c1_i32 : i32
    %c0_i32 = arith.constant 0 : i32
    %c0_i32_0 = arith.constant 0 : i32
    return %c0_i32, %0 : i32, i32
  }
  func.func @transform_2(%arg0: i32) -> (i32, i32) {
    %c0_i32 = arith.constant 0 : i32
    %c0_i32_0 = arith.constant 0 : i32
    %c0_i32_1 = arith.constant 0 : i32
    return %c0_i32, %c0_i32_0 : i32, i32
  }
  func.func @transform_3(%arg0: i32) -> (i32, i32) {
    %c0_i32 = arith.constant 0 : i32
    %c0_i32_0 = arith.constant 0 : i32
    %c0_i32_1 = arith.constant 0 : i32
    return %c0_i32, %c0_i32_0 : i32, i32
  }
  func.func @transform_4(%arg0: i32) -> (i32, i32) {
    %c0_i32 = arith.constant 0 : i32
    %c0_i32_0 = arith.constant 0 : i32
    return %c0_i32, %arg0 : i32, i32
  }
}

</mosaic_0001>

<llo_original>
// kernel: tpu_custom_call.1
$region0: #{tpu_custom_call.1}
  #allocation0 [shape = 'u32[]', space=smem, size = 0x4, offset = 0x4, fixed_abs, tag = 'smem constant byte address 0x4 - core index']
  #allocation1 [shape = 'u32[144,128]{1,0:T(1,128)}', space=vmem, size = 0x12000, scoped, tag = 'internal scratch']
  %s0 = inlined_call_operand.vmem [shape: f32[4,256], index: 0, kind: input, shape index: {}]
  %s1 = inlined_call_operand.hbm [shape: f32[4,256], index: 1, kind: input, shape index: {}]
  %s2 = inlined_call_operand.hbm [shape: f32[8,16], index: 2, kind: input, shape index: {}]
  %s3 = inlined_call_operand.vmem [shape: f32[8,1], index: 3, kind: input, shape index: {}]
  %s4 = inlined_call_operand.hbm [shape: f32[8,128], index: 4, kind: output, shape index: {}]
  %s5 = sld [smem:[#allocation0]]
  $region34: #{tpu_custom_call.1} parent=0
    _
  %s7 = ssub.s32 1, %s5
  %s8 = scalar_select 0, %s7, %s5
  $region1: #{tpu_custom_call.1} parent=0
    #allocation2 [shape = 'u8[2048]{0}', space=vmem, size = 0x800, scoped, tag = 'input window, operand 1, single buffered']
    #allocation3 [shape = 's32[1]{0}', space=sflag, size = 0x4, scoped, tag = 'scoped memory for tpu_custom_call.1']
    #allocation4 [shape = 's32[1]{0}', space=sflag, size = 0x4, scoped, tag = 'scoped memory for tpu_custom_call.1']
    #allocation5 [shape = 'u8[4096]{0}', space=vmem, size = 0x1000, scoped, tag = 'input window, operand 2, single buffered']
    #allocation6 [shape = 's32[1]{0}', space=sflag, size = 0x4, scoped, tag = 'scoped memory for tpu_custom_call.1']
    #allocation7 [shape = 'u8[4096]{0}', space=vmem, size = 0x1000, scoped, tag = 'output window, operand 0, single buffered']
    %9 = vsyncpa [#allocation3], 0
    %10 = vsyncpa [#allocation6], 0
    %11 = vsyncpa [#allocation4], 0
    // Predicated region
    $region2: #{tpu_custom_call.1} parent=1 // pred_check
      _
    $region3: #{tpu_custom_call.1} parent=1 // pred_check_branch
      %13 = sbr.rel (0) target = $region5
    $region4: #{tpu_custom_call.1} parent=1 // pred_region
      _
    $region5: #{tpu_custom_call.1} parent=1 // pred_fallthru
      _
    // Predicated region
    $region6: #{tpu_custom_call.1} parent=1 // pred_check
      _
    $region7: #{tpu_custom_call.1} parent=1 // pred_check_branch
      %15 = sbr.rel (0) target = $region9
    $region8: #{tpu_custom_call.1} parent=1 // pred_region
      %s16 = sadd.s32 0, 1
      %s18 = ssub.s32 64, 64
      %19 = vsyncadd [#allocation3], %s18
      %s20 = smul.addr %s16, 64
      %s21 = scalar_lea.hbm %s1, %s20
      %s23 = sshll.u32 [#allocation2], 4
      %s24 = int_to_ptr.vmem [resolvable:$true] %s23
      %26 = dma.hbm_to_vmem [thread:$0]  %s21, 64, %s24, [#allocation3]
    $region9: #{tpu_custom_call.1} parent=1 // pred_fallthru
      _
    // Predicated region
    $region10: #{tpu_custom_call.1} parent=1 // pred_check
      _
    $region11: #{tpu_custom_call.1} parent=1 // pred_check_branch
      %28 = sbr.rel (0) target = $region13
    $region12: #{tpu_custom_call.1} parent=1 // pred_region
      %s30 = ssub.s32 128, 128
      %31 = vsyncadd [#allocation6], %s30
      %s33 = sshll.u32 [#allocation5], 4
      %s34 = int_to_ptr.vmem [resolvable:$true] %s33
      %36 = dma.hbm_to_vmem [thread:$0]  %s2, 128, %s34, [#allocation6]
    $region13: #{tpu_custom_call.1} parent=1 // pred_fallthru
      _
    // Predicated region
    $region14: #{tpu_custom_call.1} parent=1 // pred_check
      _
    $region15: #{tpu_custom_call.1} parent=1 // pred_check_branch
      %38 = sbr.rel (0) target = $region17
    $region16: #{tpu_custom_call.1} parent=1 // pred_region
      _
    $region17: #{tpu_custom_call.1} parent=1 // pred_fallthru
      _
    // Predicated region
    $region18: #{tpu_custom_call.1} parent=1 // pred_check
      _
    $region19: #{tpu_custom_call.1} parent=1 // pred_check_branch
      %40 = sbr.rel (0) target = $region21
    $region20: #{tpu_custom_call.1} parent=1 // pred_region
      %41 = dma.done [#allocation3], 64
    $region21: #{tpu_custom_call.1} parent=1 // pred_fallthru
      _
    // Predicated region
    $region22: #{tpu_custom_call.1} parent=1 // pred_check
      _
    $region23: #{tpu_custom_call.1} parent=1 // pred_check_branch
      %43 = sbr.rel (0) target = $region25
    $region24: #{tpu_custom_call.1} parent=1 // pred_region
      %44 = dma.done [#allocation6], 128
    $region25: #{tpu_custom_call.1} parent=1 // pred_fallthru
      _
    %s45 = sadd.s32 0, 1
    %v46 = vld [vmem:[%s0] sm:$0xf]
    %v47 = vld [vmem:[#allocation2] sm:$0xf]
    %v50 = vrot.slane %v46, 4
    %v51 = vrot.slane %v47, 4
    %52 = vrot.lane.b32.xlu0 %v50, 127
    %v53 = vpop.permute.xlu0 %52
    %54 = vrot.lane.b32.xlu0 %v51, 127
    %v55 = vpop.permute.xlu0 %54
    %vm56 = vcmask 1039360
    %v57 = vsel %vm56, %v53, %v55
    %59 = vrot.lane.b32.xlu0 %v46, 126
    %v60 = vpop.permute.xlu0 %59
    %61 = vrot.lane.b32.xlu0 %v47, 126
    %v62 = vpop.permute.xlu0 %61
    %vm63 = vcmask 1031168
    %v64 = vsel %vm63, %v60, %v62
    %66 = vrot.lane.b32.xlu0 %v50, 125
    %v67 = vpop.permute.xlu0 %66
    %68 = vrot.lane.b32.xlu0 %v51, 125
    %v69 = vpop.permute.xlu0 %68
    %vm70 = vcmask 1022976
    %v71 = vsel %vm70, %v67, %v69
    %vm73 = vcmask 1043456
    %v74 = vsel %vm73, %v46, %v57
    %v75 = vsel %vm73, %v64, %v71
    %v76 = vld [vmem:[#allocation5] sm:$0xff]
    %v77 = vld [vmem:[%s3] sm:$0xff]
    %79 = vset.pattern.permute.xlu0 0
    %80 = vperm.xlu0 %79, %v77
    %v81 = vpop.permute.xlu0 %80
    %vm83 = vcmask 130048
    %v85 = vsel %vm83, %v76, 0
    %87 = vmatprep.subr.mxu0 0.0
    %88 = vmatpush1.msra.mxu0 0.0
    %89 = vmatprep.subr.mxu0 0.0
    %90 = vmatpush1.msra.mxu0 0.0
    %91 = vmatprep.subr.mxu0 0.0
    %92 = vmatpush1.msra.mxu0 0.0
    %93 = vmatprep.subr.mxu0 0.0
    %94 = vmatpush1.msra.mxu0 0.0
    %95 = vmatprep.subr.mxu0 0.0
    %96 = vmatpush1.msra.mxu0 0.0
    %97 = vmatprep.subr.mxu0 0.0
    %98 = vmatpush1.msra.mxu0 0.0
    %99 = vmatprep.subr.mxu0 0.0
    %100 = vmatpush1.msra.mxu0 0.0
    %101 = vmatprep.subr.mxu0 0.0
    %102 = vmatpush1.msra.mxu0 0.0
    %103 = vmatprep.subr.mxu0 0.0
    %104 = vmatpush1.msra.mxu0 0.0
    %105 = vmatprep.subr.mxu0 0.0
    %106 = vmatpush1.msra.mxu0 0.0
    %107 = vmatprep.subr.mxu0 0.0
    %108 = vmatpush1.msra.mxu0 0.0
    %109 = vmatprep.subr.mxu0 0.0
    %110 = vmatpush1.msra.mxu0 0.0
    %111 = vmatprep.subr.mxu0 0.0
    %112 = vmatpush1.msra.mxu0 0.0
    %113 = vmatprep.subr.mxu0 0.0
    %114 = vmatpush1.msra.mxu0 0.0
    %115 = vmatprep.subr.mxu0 0.0
    %116 = vmatpush1.msra.mxu0 %v75
    %117 = vmatprep.subr.mxu0 0.0
    %118 = vmatpush1.msra.mxu0 %v74
    %119 = vmatprep.subr.mxu0 0.0
    %120 = vmatpush2.msra.mxu0 0.0
    %121 = vmatprep.subr.mxu0 0.0
    %122 = vmatpush2.msra.mxu0 0.0
    %123 = vmatprep.subr.mxu0 0.0
    %124 = vmatpush2.msra.mxu0 0.0
    %125 = vmatprep.subr.mxu0 0.0
    %126 = vmatpush2.msra.mxu0 0.0
    %127 = vmatprep.subr.mxu0 0.0
    %128 = vmatpush2.msra.mxu0 0.0
    %129 = vmatprep.subr.mxu0 0.0
    %130 = vmatpush2.msra.mxu0 0.0
    %131 = vmatprep.subr.mxu0 0.0
    %132 = vmatpush2.msra.mxu0 0.0
    %133 = vmatprep.subr.mxu0 0.0
    %134 = vmatpush2.msra.mxu0 0.0
    %135 = vmatprep.subr.mxu0 0.0
    %136 = vmatpush2.msra.mxu0 0.0
    %137 = vmatprep.subr.mxu0 0.0
    %138 = vmatpush2.msra.mxu0 0.0
    %139 = vmatprep.subr.mxu0 0.0
    %140 = vmatpush2.msra.mxu0 0.0
    %141 = vmatprep.subr.mxu0 0.0
    %142 = vmatpush2.msra.mxu0 0.0
    %143 = vmatprep.subr.mxu0 0.0
    %144 = vmatpush2.msra.mxu0 0.0
    %145 = vmatprep.subr.mxu0 0.0
    %146 = vmatpush2.msra.mxu0 0.0
    %147 = vmatprep.subr.mxu0 0.0
    %148 = vmatpush2.msra.mxu0 0.0
    %149 = vmatprep.subr.mxu0 0.0
    %150 = vmatpush2.msra.mxu0 0.0
    %151 = vmatprep.mubr.f32.mxu0 0.0
    %152 = vmatmul.mubr.f32.gmra.mxu0 %v85
    %v153 = vpop.f32.mrf.mxu0
    %v154 = vadd.f32 %v81, %v153
    %v155 = vpop.f32.mrf.mxu0
    %156 = vdwg.mxu0
    %157 = vst [vmem:[#allocation7] sm:$0xff] %v154
    // Predicated region
    $region26: #{tpu_custom_call.1} parent=1 // pred_check
      _
    $region27: #{tpu_custom_call.1} parent=1 // pred_check_branch
      %159 = sbr.rel (0) target = $region29
    $region28: #{tpu_custom_call.1} parent=1 // pred_region
      %s161 = ssub.s32 128, 128
      %162 = vsyncadd [#allocation4], %s161
      %s164 = sshll.u32 [#allocation7], 4
      %s165 = int_to_ptr.vmem [resolvable:$true] %s164
      %167 = dma.vmem_to_hbm [thread:$0]  %s165, 128, %s4, [#allocation4]
    $region29: #{tpu_custom_call.1} parent=1 // pred_fallthru
      _
    // Predicated region
    $region30: #{tpu_custom_call.1} parent=1 // pred_check
      _
    $region31: #{tpu_custom_call.1} parent=1 // pred_check_branch
      %169 = sbr.rel (0) target = $region33
    $region32: #{tpu_custom_call.1} parent=1 // pred_region
      %170 = dma.done [#allocation4], 128
    $region33: #{tpu_custom_call.1} parent=1 // pred_fallthru
      _
    %171 = vsyncpa [#allocation3], 1
    %172 = vsyncpa [#allocation6], 1
    %173 = vsyncpa [#allocation4], 1

</llo_original>
